<compile_context>
chip_gen: v7x
topology: tpu7x:2x2x1
jax: 0.10.0
libtpu: 0.0.40
codegen_flags: <defaults>
</compile_context>

<pallas_src>
import functools
import math

import jax
import jax.numpy as jnp
from jax.experimental import pallas as pl
from jax.experimental.pallas import tpu as pltpu


# ----------------------------- Pallas kernels -----------------------------

def conv1x1_kernel(x_ref, w_ref, b_ref, o_ref):
    # x_ref: (Cin, ts) spatial tile; w_ref: (Cout, Cin); b_ref: (Cout, 1).
    acc = jnp.dot(w_ref[...], x_ref[...], preferred_element_type=jnp.float32)
    o_ref[...] = (acc + b_ref[...]).astype(o_ref.dtype)


def trilinear_kernel(lo_ref, hi_ref, ah_ref, awt_ref, o_ref, *, d_in, d_out):
    # lo_ref / hi_ref: (C, H, W) input depth planes bracketing this output plane.
    # ah_ref: (H_out, H) row-interp matrix.  awt_ref: (W, W_out) col-interp matrix.
    p = pl.program_id(1)
    # PyTorch align_corners=False: src = (p + 0.5) * (D_in / D_out) - 0.5, clamped >= 0.
    # Computed in exact integer arithmetic: num = 2*D_out*src.
    num = jnp.maximum((2 * p + 1) * d_in - d_out, 0)
    lam = (num % (2 * d_out)).astype(jnp.float32) * (1.0 / (2.0 * d_out))

    plane = lo_ref[...] * (1.0 - lam) + hi_ref[...] * lam            # (C, H, W)
    c, h, w = plane.shape
    h_out = ah_ref.shape[0]
    w_out = awt_ref.shape[1]

    # W interpolation: batched over C: (H, W) @ (W, W_out).
    awt_b = jnp.broadcast_to(awt_ref[...][None], (c, w, w_out))
    t = jax.lax.dot_general(plane, awt_b,
                            dimension_numbers=(((2,), (1,)), ((0,), (0,))),
                            preferred_element_type=jnp.float32)      # (C, H, W_out)
    # H interpolation: batched over C: (H_out, H) @ (H, W_out).
    ah_b = jnp.broadcast_to(ah_ref[...][None], (c, h_out, h))
    y = jax.lax.dot_general(ah_b, t,
                            dimension_numbers=(((2,), (1,)), ((0,), (0,))),
                            preferred_element_type=jnp.float32)      # (C, H_out, W_out)
    o_ref[...] = y.astype(o_ref.dtype)


# ----------------------------- Pallas wrappers -----------------------------

def _pick_spatial_tile(s):
    for t in (2048, 1024, 512, 256, 128):
        if s % t == 0:
            return t
    return None


def pallas_conv1x1(x, w, b):
    """x: (N, Cin, D, H, W); w: (Cout, Cin); b: (Cout,) -> (N, Cout, D, H, W)."""
    n, cin, d, h, wdim = x.shape
    cout = w.shape[0]
    s = d * h * wdim
    x3 = x.reshape(n, cin, s)                      # layout-preserving (free)

    ts = _pick_spatial_tile(s)
    s_run = s
    if ts is None:                                 # pad spatial axis to a lane multiple
        s_run = ((s + 127) // 128) * 128
        x3 = jnp.pad(x3, ((0, 0), (0, 0), (0, s_run - s)))
        ts = _pick_spatial_tile(s_run)

    out = pl.pallas_call(
        conv1x1_kernel,
        out_shape=jax.ShapeDtypeStruct((n, cout, s_run), jnp.float32),
        grid=(n, s_run // ts),
        in_specs=[
            pl.BlockSpec((None, cin, ts), lambda i, j: (i, 0, j)),
            pl.BlockSpec((cout, cin), lambda i, j: (0, 0)),
            pl.BlockSpec((cout, 1), lambda i, j: (0, 0)),
        ],
        out_specs=pl.BlockSpec((None, cout, ts), lambda i, j: (i, 0, j)),
        compiler_params=pltpu.CompilerParams(
            dimension_semantics=("parallel", "parallel")),
    )(x3, w, b.reshape(cout, 1))

    if s_run != s:
        out = out[:, :, :s]
    return out.reshape(n, cout, d, h, wdim)


def _as_triple(sf):
    if isinstance(sf, (tuple, list)):
        assert len(sf) == 3
        return tuple(float(v) for v in sf)
    return (float(sf),) * 3


def _interp_matrix(n_in, n_out):
    """PyTorch linear interp weights, align_corners=False (half-pixel). Shape (n_out, n_in)."""
    p = jnp.arange(n_out, dtype=jnp.float32)
    src = jnp.maximum((p + 0.5) * (float(n_in) / float(n_out)) - 0.5, 0.0)
    i0 = jnp.minimum(jnp.floor(src).astype(jnp.int32), n_in - 1)
    i1 = jnp.minimum(i0 + 1, n_in - 1)
    lam = src - i0.astype(jnp.float32)
    return (jax.nn.one_hot(i0, n_in, dtype=jnp.float32) * (1.0 - lam)[:, None]
            + jax.nn.one_hot(i1, n_in, dtype=jnp.float32) * lam[:, None])


def pallas_trilinear_upsample(y, scale_factor):
    """y: (N, C, D, H, W) -> (N, C, D*sd, H*sh, W*sw), trilinear, align_corners=False."""
    n, c, d, h, w = y.shape
    sd, sh, sw = _as_triple(scale_factor)
    d_out, h_out, w_out = int(d * sd), int(h * sh), int(w * sw)

    ah = _interp_matrix(h, h_out)                  # (H_out, H)
    awt = _interp_matrix(w, w_out).T               # (W, W_out)

    two_dout = 2 * d_out

    def _d0(p):
        num = jnp.maximum((2 * p + 1) * d - d_out, 0)
        return jnp.minimum(num // two_dout, d - 1)

    def lo_map(i, p):
        return (i, 0, _d0(p), 0, 0)

    def hi_map(i, p):
        return (i, 0, jnp.minimum(_d0(p) + 1, d - 1), 0, 0)

    kernel = functools.partial(trilinear_kernel, d_in=d, d_out=d_out)
    return pl.pallas_call(
        kernel,
        out_shape=jax.ShapeDtypeStruct((n, c, d_out, h_out, w_out), jnp.float32),
        grid=(n, d_out),
        in_specs=[
            pl.BlockSpec((None, c, None, h, w), lo_map),
            pl.BlockSpec((None, c, None, h, w), hi_map),
            pl.BlockSpec((h_out, h), lambda i, p: (0, 0)),
            pl.BlockSpec((w, w_out), lambda i, p: (0, 0)),
        ],
        out_specs=pl.BlockSpec((None, c, None, h_out, w_out),
                               lambda i, p: (i, 0, p, 0, 0)),
        compiler_params=pltpu.CompilerParams(
            dimension_semantics=("parallel", "parallel")),
    )(y, y, ah, awt)


def unet_dsv3_forward(x, conv_w, conv_b, scale_factor):
    """Equivalent of UnetDsv3.forward: Conv3d(k=1) -> Upsample(trilinear)."""
    y = pallas_conv1x1(x, conv_w, conv_b)
    return pallas_trilinear_upsample(y, scale_factor)


# ----------------------------- pure-JAX reference -----------------------------

def reference_forward(x, conv_w, conv_b, scale_factor):
    y = jnp.einsum('ncdhw,oc->nodhw', x, conv_w) + conv_b[None, :, None, None, None]
    _, _, d, h, w = y.shape
    sd, sh, sw = _as_triple(scale_factor)
    d_out, h_out, w_out = int(d * sd), int(h * sh), int(w * sw)

    def idx(n_in, n_out):
        p = jnp.arange(n_out, dtype=jnp.float32)
        src = jnp.maximum((p + 0.5) * (float(n_in) / float(n_out)) - 0.5, 0.0)
        i0 = jnp.minimum(jnp.floor(src).astype(jnp.int32), n_in - 1)
        i1 = jnp.minimum(i0 + 1, n_in - 1)
        return i0, i1, src - i0.astype(jnp.float32)

    w0, w1, lw = idx(w, w_out)
    h0, h1, lh = idx(h, h_out)
    d0, d1, ld = idx(d, d_out)
    y = jnp.take(y, w0, axis=4) * (1.0 - lw) + jnp.take(y, w1, axis=4) * lw
    y = (jnp.take(y, h0, axis=3) * (1.0 - lh)[:, None]
         + jnp.take(y, h1, axis=3) * lh[:, None])
    y = (jnp.take(y, d0, axis=2) * (1.0 - ld)[:, None, None]
         + jnp.take(y, d1, axis=2) * ld[:, None, None])
    return y


# ----------------------------- main -----------------------------

if __name__ == "__main__":
    key = jax.random.PRNGKey(0)
    k_x, k_w, k_b = jax.random.split(key, 3)

    N, Cin, D, H, W = 2, 4, 4, 16, 16
    Cout = 4
    scale_factor = 2

    x = jax.random.normal(k_x, (N, Cin, D, H, W), jnp.float32)
    # nn.Conv3d(k=1) default init: U(-1/sqrt(fan_in), 1/sqrt(fan_in)).
    bound = 1.0 / math.sqrt(Cin)
    conv_w = jax.random.uniform(k_w, (Cout, Cin), jnp.float32, -bound, bound)
    conv_b = jax.random.uniform(k_b, (Cout,), jnp.float32, -bound, bound)

    out = unet_dsv3_forward(x, conv_w, conv_b, scale_factor)
    out = jax.block_until_ready(out)

    ref = reference_forward(x, conv_w, conv_b, scale_factor)
    assert out.shape == (N, Cout, D * scale_factor, H * scale_factor, W * scale_factor)
    assert jnp.allclose(out, ref, atol=1e-4, rtol=1e-4), "Pallas output mismatch vs reference"

    print("KERNEL_OK")
</pallas_src>

<mosaic_0001>
module attributes {stable_mosaic.version = 11 : i64} {
  func.func @conv1x1_kernel(%arg0: i32, %arg1: i32, %arg2: memref<1x4x1024xf32, #tpu.memory_space<vmem>>, %arg3: memref<4x4xf32, #tpu.memory_space<vmem>>, %arg4: memref<4x1xf32, #tpu.memory_space<vmem>>, %arg5: memref<1x4x1024xf32, #tpu.memory_space<vmem>>) attributes {dimension_semantics = [#tpu.dimension_semantics<parallel>, #tpu.dimension_semantics<parallel>], iteration_bounds = array<i64: 2, 1>, scalar_prefetch = 0 : i64, scratch_operands = 0 : i64, tpu.core_type = #tpu.core_type<tc>, window_params = [{transform_indices = @transform_0, window_bounds = array<i64: 1, 4, 1024>}, {pipeline_mode = #tpu.pipeline_mode<synchronous>, transform_indices = @transform_1, window_bounds = array<i64: 4, 4>}, {pipeline_mode = #tpu.pipeline_mode<synchronous>, transform_indices = @transform_2, window_bounds = array<i64: 4, 1>}, {transform_indices = @transform_3, window_bounds = array<i64: 1, 4, 1024>}]} {
    %c0 = arith.constant 0 : index
    %c0_0 = arith.constant 0 : index
    %0 = vector.load %arg3[%c0, %c0_0] : memref<4x4xf32, #tpu.memory_space<vmem>>, vector<4x4xf32>
    %c0_1 = arith.constant 0 : index
    %c0_2 = arith.constant 0 : index
    %c0_3 = arith.constant 0 : index
    %1 = vector.load %arg2[%c0_1, %c0_2, %c0_3] : memref<1x4x1024xf32, #tpu.memory_space<vmem>>, vector<1x4x1024xf32>
    %2 = vector.shape_cast %1 : vector<1x4x1024xf32> to vector<4x1024xf32>
    %cst = arith.constant dense<0.000000e+00> : vector<4x1024xf32>
    %3 = tpu.matmul %0, %2, %cst {dimension_numbers = #tpu.dot_dimension_numbers<[1], [0], [0], [1], [0, 0, 1, 1], [], []>} : vector<4x4xf32>, vector<4x1024xf32>, vector<4x1024xf32> -> vector<4x1024xf32>
    %c0_4 = arith.constant 0 : index
    %c0_5 = arith.constant 0 : index
    %4 = vector.load %arg4[%c0_4, %c0_5] : memref<4x1xf32, #tpu.memory_space<vmem>>, vector<4x1xf32>
    %5 = vector.broadcast %4 : vector<4x1xf32> to vector<4x1024xf32>
    %6 = arith.addf %3, %5 : vector<4x1024xf32>
    %c0_6 = arith.constant 0 : index
    %c0_7 = arith.constant 0 : index
    %c0_8 = arith.constant 0 : index
    %7 = vector.load %arg5[%c0_6, %c0_7, %c0_8] : memref<1x4x1024xf32, #tpu.memory_space<vmem>>, vector<1x4x1024xf32>
    %8 = vector.shape_cast %7 : vector<1x4x1024xf32> to vector<4x1024xf32>
    %9 = vector.shape_cast %6 : vector<4x1024xf32> to vector<1x4x1024xf32>
    tpu.vector_store %arg5[%c0_6, %c0_7, %c0_8], %9 {strides = array<i32>} : memref<1x4x1024xf32, #tpu.memory_space<vmem>>, vector<1x4x1024xf32>,
    return
  }
  func.func @transform_0(%arg0: i32, %arg1: i32) -> (i32, i32, i32) {
    %c0_i32 = arith.constant 0 : i32
    %c0_i32_0 = arith.constant 0 : i32
    return %arg0, %c0_i32, %arg1 : i32, i32, i32
  }
  func.func @transform_1(%arg0: i32, %arg1: i32) -> (i32, i32) {
    %c0_i32 = arith.constant 0 : i32
    %c0_i32_0 = arith.constant 0 : i32
    %c0_i32_1 = arith.constant 0 : i32
    return %c0_i32, %c0_i32_0 : i32, i32
  }
  func.func @transform_2(%arg0: i32, %arg1: i32) -> (i32, i32) {
    %c0_i32 = arith.constant 0 : i32
    %c0_i32_0 = arith.constant 0 : i32
    %c0_i32_1 = arith.constant 0 : i32
    return %c0_i32, %c0_i32_0 : i32, i32
  }
  func.func @transform_3(%arg0: i32, %arg1: i32) -> (i32, i32, i32) {
    %c0_i32 = arith.constant 0 : i32
    %c0_i32_0 = arith.constant 0 : i32
    return %arg0, %c0_i32, %arg1 : i32, i32, i32
  }
}

</mosaic_0001>

<llo_original>
// kernel: tpu_custom_call.1
$region0: #{tpu_custom_call.1}
  #allocation0 [shape = 'u32[]', space=smem, size = 0x4, offset = 0x4, fixed_abs, tag = 'smem constant byte address 0x4 - core index']
  #allocation1 [shape = 'u32[144,128]{1,0:T(1,128)}', space=vmem, size = 0x12000, scoped, tag = 'internal scratch']
  %s0 = inlined_call_operand.hbm [shape: f32[2,4,1024], index: 0, kind: input, shape index: {}]
  %s1 = inlined_call_operand.vmem [shape: f32[4,4], index: 1, kind: input, shape index: {}]
  %s2 = inlined_call_operand.vmem [shape: f32[4,1], index: 2, kind: input, shape index: {}]
  %s3 = inlined_call_operand.hbm [shape: f32[2,4,1024], index: 3, kind: output, shape index: {}]
  %s4 = sld [smem:[#allocation0]]
  $region49: #{tpu_custom_call.1} parent=0
    _
  %s6 = ssub.s32 1, %s4
  %s7 = scalar_select 0, %s6, %s4
  $region1: #{tpu_custom_call.1} parent=0
    #allocation2 [shape = 'u8[32768]{0}', space=vmem, size = 0x8000, scoped, tag = 'input window, operand 0']
    #allocation3 [shape = 's32[2]{0}', space=sflag, size = 0x8, scoped, tag = 'scoped memory for tpu_custom_call.1']
    #allocation4 [shape = 's32[2]{0}', space=sflag, size = 0x8, scoped, tag = 'scoped memory for tpu_custom_call.1']
    #allocation5 [shape = 'u8[32768]{0}', space=vmem, size = 0x8000, scoped, tag = 'output window, operand 0']
    %8 = vsyncpa [#allocation3], 0
    %s9 = scalar_lea.sflag [#allocation3], 1
    %10 = vsyncpa %s9, 0
    %11 = vsyncpa [#allocation4], 0
    %s12 = scalar_lea.sflag [#allocation4], 1
    %13 = vsyncpa %s12, 0
    loop: start=0, step=1, limit=4
    $region2: #{tpu_custom_call.1} parent=1 // loop_pre_header
      _
    $region3: #{tpu_custom_call.1} parent=1 // loop_header
      %s15 = sphi 0, %s19
      %p16 = scmp.ge.s32.totalorder %s15, 4
      %s22 = sphi 0, %s34
      %s23 = sphi 0, %s30
      %s24 = sphi 0, %s22
      %s25 = sphi 0, %s23
      %s26 = sphi 0, %s24
      %s27 = sphi 0, %s25
      %s39 = sphi 0, %s41
      %s42 = sphi 0, %s39
      %s43 = sphi 0, %s42
      %s59 = sphi 0, %s43
      %s63 = sphi 0, %s63
      %s65 = sphi 0, %s63
      %s66 = sphi 0, %s65
      %s80 = sphi 0, %s66
      %s84 = sphi 0, %s84
      %s86 = sphi 0, %s84
      %s87 = sphi 0, %s86
      %s101 = sphi 0, %s87
      %s109 = sphi 0, %s111
      %s112 = sphi 0, %s109
      %s113 = sphi 0, %s112
      %s129 = sphi 0, %s113
    $region4: #{tpu_custom_call.1} parent=1 // loop_header_branch
      %18 = sbr.rel (%p16) target = $region8
    $region5: #{tpu_custom_call.1} parent=1 // loop_body
      %s20 = ssub.s32 %s15, 1
      %s21 = ssub.s32 %s15, 2
      %s28 = sadd.s32 1, %s23
      %p29 = scmp.ge.s32.totalorder %s28, 1
      %s30 = scalar_select %p29, 0, %s28
      %s31 = sadd.s32 1, %s22
      %s32 = scalar_select %p29, %s31, %s22
      %p33 = scmp.ge.s32.totalorder %s32, 2
      %s34 = scalar_select %p33, 0, %s32
      %s35 = ssub.s32 %s22, %s34
      %s36 = ssub.s32 %s23, %s30
      %s37 = sor.u32 %s35, %s36
      %p38 = scmp.eq.s32.totalorder %s37, 0
      %s40 = sadd.s32 %s39, 1
      %s41 = scalar_select %p38, %s39, %s40
      %p44 = pneg %p38
      %p45 = scmp.eq.s32.totalorder %s15, 1
      %p46 = por %p44, %p45
      %p47 = scmp.ne.s32.totalorder %s39, %s42
      %p48 = scmp.eq.s32.totalorder %s15, 0
      %p49 = por %p47, %p48
      %p50 = scmp.ne.s32.totalorder %s39, %s42
      %p51 = scmp.eq.s32.totalorder %s20, 1
      %p52 = por %p50, %p51
      %p53 = scmp.ne.s32.totalorder %s42, %s43
      %p54 = scmp.eq.s32.totalorder %s20, 0
      %p55 = por %p53, %p54
      %p56 = scmp.ne.s32.totalorder %s42, %s43
      %p57 = scmp.eq.s32.totalorder %s21, 1
      %p58 = por %p56, %p57
      %p60 = scmp.ne.s32.totalorder %s43, %s59
      %p61 = scmp.eq.s32.totalorder %s21, 0
      %p62 = por %p60, %p61
      %s64 = sadd.s32 %s63, 1
      %p67 = scmp.eq.s32.totalorder %s15, 1
      %p68 = scmp.ne.s32.totalorder %s63, %s65
      %p69 = scmp.eq.s32.totalorder %s15, 0
      %p70 = por %p68, %p69
      %p71 = scmp.ne.s32.totalorder %s63, %s65
      %p72 = scmp.eq.s32.totalorder %s20, 1
      %p73 = por %p71, %p72
      %p74 = scmp.ne.s32.totalorder %s65, %s66
      %p75 = scmp.eq.s32.totalorder %s20, 0
      %p76 = por %p74, %p75
      %p77 = scmp.ne.s32.totalorder %s65, %s66
      %p78 = scmp.eq.s32.totalorder %s21, 1
      %p79 = por %p77, %p78
      %p81 = scmp.ne.s32.totalorder %s66, %s80
      %p82 = scmp.eq.s32.totalorder %s21, 0
      %p83 = por %p81, %p82
      %s85 = sadd.s32 %s84, 1
      %p88 = scmp.eq.s32.totalorder %s15, 1
      %p89 = scmp.ne.s32.totalorder %s84, %s86
      %p90 = scmp.eq.s32.totalorder %s15, 0
      %p91 = por %p89, %p90
      %p92 = scmp.ne.s32.totalorder %s84, %s86
      %p93 = scmp.eq.s32.totalorder %s20, 1
      %p94 = por %p92, %p93
      %p95 = scmp.ne.s32.totalorder %s86, %s87
      %p96 = scmp.eq.s32.totalorder %s20, 0
      %p97 = por %p95, %p96
      %p98 = scmp.ne.s32.totalorder %s86, %s87
      %p99 = scmp.eq.s32.totalorder %s21, 1
      %p100 = por %p98, %p99
      %p102 = scmp.ne.s32.totalorder %s87, %s101
      %p103 = scmp.eq.s32.totalorder %s21, 0
      %p104 = por %p102, %p103
      %s105 = ssub.s32 %s22, %s34
      %s106 = ssub.s32 %s23, %s30
      %s107 = sor.u32 %s105, %s106
      %p108 = scmp.eq.s32.totalorder %s107, 0
      %s110 = sadd.s32 %s109, 1
      %s111 = scalar_select %p108, %s109, %s110
      %p114 = pneg %p108
      %p115 = scmp.eq.s32.totalorder %s15, 1
      %p116 = por %p114, %p115
      %p117 = scmp.ne.s32.totalorder %s109, %s112
      %p118 = scmp.eq.s32.totalorder %s15, 0
      %p119 = por %p117, %p118
      %p120 = scmp.ne.s32.totalorder %s109, %s112
      %p121 = scmp.eq.s32.totalorder %s20, 1
      %p122 = por %p120, %p121
      %p123 = scmp.ne.s32.totalorder %s112, %s113
      %p124 = scmp.eq.s32.totalorder %s20, 0
      %p125 = por %p123, %p124
      %p126 = scmp.ne.s32.totalorder %s112, %s113
      %p127 = scmp.eq.s32.totalorder %s21, 1
      %p128 = por %p126, %p127
      %p130 = scmp.ne.s32.totalorder %s113, %s129
      %p131 = scmp.eq.s32.totalorder %s21, 0
      %p132 = por %p130, %p131
      %p133 = scmp.le.s32.totalorder 1, %s15
      %p134 = scmp.lt.s32.totalorder %s15, 3
      %p135 = pnand %p133, %p134
      %p136 = pneg %p135
      // Predicated region
      $region9: #{tpu_custom_call.1} parent=5 // pred_check
        _
      $region10: #{tpu_custom_call.1} parent=5 // pred_check_branch
        %138 = sbr.rel (%p135) target = $region12
      $region11: #{tpu_custom_call.1} parent=5 // pred_region
        %s139 = ssub.s32 %s15, 1
        // Predicated region
        $region13: #{tpu_custom_call.1} parent=11 // pred_check
          %p140 = pneg %p76
        $region14: #{tpu_custom_call.1} parent=11 // pred_check_branch
          %142 = sbr.rel (%p140) target = $region16
        $region15: #{tpu_custom_call.1} parent=11 // pred_region
          _
        $region16: #{tpu_custom_call.1} parent=11 // pred_fallthru
          _
        // Predicated region
        $region17: #{tpu_custom_call.1} parent=11 // pred_check
          %p143 = pneg %p97
        $region18: #{tpu_custom_call.1} parent=11 // pred_check_branch
          %145 = sbr.rel (%p143) target = $region20
        $region19: #{tpu_custom_call.1} parent=11 // pred_region
          _
        $region20: #{tpu_custom_call.1} parent=11 // pred_fallthru
          _
      $region12: #{tpu_custom_call.1} parent=5 // pred_fallthru
        _
      %p146 = scmp.lt.s32.totalorder %s15, 2
      // Predicated region
      $region21: #{tpu_custom_call.1} parent=5 // pred_check
        %p147 = pneg %p146
      $region22: #{tpu_custom_call.1} parent=5 // pred_check_branch
        %149 = sbr.rel (%p147) target = $region24
      $region23: #{tpu_custom_call.1} parent=5 // pred_region
        // Predicated region
        $region25: #{tpu_custom_call.1} parent=23 // pred_check
          %p150 = pneg %p49
        $region26: #{tpu_custom_call.1} parent=23 // pred_check_branch
          %152 = sbr.rel (%p150) target = $region28
        $region27: #{tpu_custom_call.1} parent=23 // pred_region
          %s153 = sand.u32 %s39, 1
          %s154 = scalar_lea.sflag [#allocation3], %s153
          %s155 = sand.u32 %s39, 1
          %s156 = smul.addr %s155, 32
          %s157 = scalar_lea.vmem [#allocation2], %s156
          %s158 = smul.u32 8, %s23
          %s160 = ssub.s32 512, 512
          %161 = vsyncadd %s154, %s160
          %s162 = smul.addr %s22, 8
          %s163 = sadd.s32 %s158, %s162
          %s164 = smul.addr %s163, 64
          %s165 = scalar_lea.hbm %s0, %s164
          %s167 = sshll.u32 %s157, 4
          %s168 = int_to_ptr.vmem [resolvable:$true] %s167
          %170 = dma.hbm_to_vmem [thread:$0]  %s165, 512, %s168, %s154
        $region28: #{tpu_custom_call.1} parent=23 // pred_fallthru
          _
      $region24: #{tpu_custom_call.1} parent=5 // pred_fallthru
        _
      %p171 = scmp.le.s32.totalorder 1, %s15
      %p172 = scmp.lt.s32.totalorder %s15, 3
      %p173 = pnand %p171, %p172
      %p174 = pneg %p173
      // Predicated region
      $region29: #{tpu_custom_call.1} parent=5 // pred_check
        _
      $region30: #{tpu_custom_call.1} parent=5 // pred_check_branch
        %176 = sbr.rel (%p173) target = $region32
      $region31: #{tpu_custom_call.1} parent=5 // pred_region
        %s177 = ssub.s32 %s15, 1
        %s178 = sand.u32 %s42, 1
        %s179 = scalar_lea.sflag [#allocation3], %s178
        %s180 = sand.u32 %s42, 1
        %s181 = smul.addr %s180, 32
        %s182 = scalar_lea.vmem [#allocation2], %s181
        // Predicated region
        $region33: #{tpu_custom_call.1} parent=31 // pred_check
          %p183 = pneg %p55
        $region34: #{tpu_custom_call.1} parent=31 // pred_check_branch
          %185 = sbr.rel (%p183) target = $region36
        $region35: #{tpu_custom_call.1} parent=31 // pred_region
          %186 = dma.done %s179, 512
        $region36: #{tpu_custom_call.1} parent=31 // pred_fallthru
          _
        %s187 = sand.u32 %s42, 1
        %s188 = scalar_lea.sflag [#allocation3], %s187
        %s189 = sand.u32 %s42, 1
        %s190 = smul.addr %s189, 32
        %s191 = scalar_lea.vmem [#allocation2], %s190
        %p192 = pneg %p55
        %p193 = pneg %p52
        %p194 = pneg %p76
        %p195 = pneg %p73
        %p196 = pneg %p97
        %p197 = pneg %p94
        %p198 = pneg %p125
        %p199 = pneg %p122
        %s200 = sand.u32 %s112, 1
        %s201 = scalar_lea.sflag [#allocation4], %s200
        %s202 = sand.u32 %s112, 1
        %s203 = smul.addr %s202, 32
        %s204 = scalar_lea.vmem [#allocation5], %s203
        %s205 = smul.u32 8, %s25
        %s206 = smul.u32 8, %s25
        %v207 = vld [vmem:[%s1] sm:$0xf]
        %v208 = vld [vmem:[%s182] sm:$0xff]
        %v209 = vld [vmem:[%s182 + $0x8] sm:$0xff]
        %v210 = vld [vmem:[%s182 + $0x10] sm:$0xff]
        %v211 = vld [vmem:[%s182 + $0x18] sm:$0xff]
        %v212 = vld [vmem:[%s2] sm:$0xf]
        %214 = vset.pattern.permute.xlu0 0
        %215 = vperm.xlu0 %214, %v212
        %v216 = vpop.permute.xlu0 %215
        %v222 = vcombine.high %v208, %v208
        %v223 = vcombine.high %v209, %v209
        %v224 = vcombine.high %v210, %v210
        %v225 = vcombine.high %v211, %v211
        %vm226 = vcmask 31744
        %v228 = vsel %vm226, %v207, 0
        %vm230 = vcmask 1043456
        %v231 = vsel %vm230, %v208, 0
        %v233 = vsel %vm230, %v222, 0
        %v235 = vsel %vm230, %v209, 0
        %v237 = vsel %vm230, %v223, 0
        %v239 = vsel %vm230, %v210, 0
        %v241 = vsel %vm230, %v224, 0
        %v243 = vsel %vm230, %v211, 0
        %v245 = vsel %vm230, %v225, 0
        %247 = vmatprep.subr.mxu0 %v233
        %248 = vmatpush1.msra.mxu0 %v231
        %249 = vmatprep.subr.mxu0 0.0
        %250 = vmatpush1.msra.mxu0 0.0
        %251 = vmatprep.subr.mxu0 0.0
        %252 = vmatpush1.msra.mxu0 0.0
        %253 = vmatprep.subr.mxu0 0.0
        %254 = vmatpush1.msra.mxu0 0.0
        %255 = vmatprep.subr.mxu0 0.0
        %256 = vmatpush1.msra.mxu0 0.0
        %257 = vmatprep.subr.mxu0 0.0
        %258 = vmatpush1.msra.mxu0 0.0
        %259 = vmatprep.subr.mxu0 0.0
        %260 = vmatpush1.msra.mxu0 0.0
        %261 = vmatprep.subr.mxu0 0.0
        %262 = vmatpush1.msra.mxu0 0.0
        %263 = vmatprep.subr.mxu0 0.0
        %264 = vmatpush1.msra.mxu0 0.0
        %265 = vmatprep.subr.mxu0 0.0
        %266 = vmatpush1.msra.mxu0 0.0
        %267 = vmatprep.subr.mxu0 0.0
        %268 = vmatpush1.msra.mxu0 0.0
        %269 = vmatprep.subr.mxu0 0.0
        %270 = vmatpush1.msra.mxu0 0.0
        %271 = vmatprep.subr.mxu0 0.0
        %272 = vmatpush1.msra.mxu0 0.0
        %273 = vmatprep.subr.mxu0 0.0
        %274 = vmatpush1.msra.mxu0 0.0
        %275 = vmatprep.subr.mxu0 0.0
        %276 = vmatpush1.msra.mxu0 0.0
        %277 = vmatprep.subr.mxu0 0.0
        %278 = vmatpush1.msra.mxu0 0.0
        %279 = vmatprep.subr.mxu0 0.0
        %280 = vmatpush1.msra.mxu0 0.0
        %281 = vmatprep.subr.mxu0 0.0
        %282 = vmatpush1.msra.mxu0 0.0
        %283 = vmatprep.subr.mxu0 0.0
        %284 = vmatpush1.msra.mxu0 0.0
        %285 = vmatprep.subr.mxu0 0.0
        %286 = vmatpush1.msra.mxu0 0.0
        %287 = vmatprep.subr.mxu0 0.0
        %288 = vmatpush1.msra.mxu0 0.0
        %289 = vmatprep.subr.mxu0 0.0
        %290 = vmatpush1.msra.mxu0 0.0
        %291 = vmatprep.subr.mxu0 0.0
        %292 = vmatpush1.msra.mxu0 0.0
        %293 = vmatprep.subr.mxu0 0.0
        %294 = vmatpush1.msra.mxu0 0.0
        %295 = vmatprep.subr.mxu0 0.0
        %296 = vmatpush1.msra.mxu0 0.0
        %297 = vmatprep.subr.mxu0 0.0
        %298 = vmatpush1.msra.mxu0 0.0
        %299 = vmatprep.subr.mxu0 0.0
        %300 = vmatpush1.msra.mxu0 0.0
        %301 = vmatprep.subr.mxu0 0.0
        %302 = vmatpush1.msra.mxu0 0.0
        %303 = vmatprep.subr.mxu0 0.0
        %304 = vmatpush1.msra.mxu0 0.0
        %305 = vmatprep.subr.mxu0 0.0
        %306 = vmatpush1.msra.mxu0 0.0
        %307 = vmatprep.subr.mxu0 0.0
        %308 = vmatpush1.msra.mxu0 0.0
        %309 = vmatprep.subr.mxu0 0.0
        %310 = vmatpush1.msra.mxu0 0.0
        %311 = vmatprep.mubr.f32.mxu0 0.0
        %312 = vmatmul.mubr.f32.gmra.mrb[0].mxu0 %v228
        %v313 = vpop.f32.mrb[0].mxu0
        %v314 = vadd.f32 %v216, %v313
        %v315 = vpop.f32.mrb[0].mxu0
        %v316 = vadd.f32 %v216, %v315
        %317 = vdwg.mxu0
        %318 = vmatprep.subr.mxu0 %v237
        %319 = vmatpush1.msra.mxu0 %v235
        %320 = vmatprep.subr.mxu0 0.0
        %321 = vmatpush1.msra.mxu0 0.0
        %322 = vmatprep.subr.mxu0 0.0
        %323 = vmatpush1.msra.mxu0 0.0
        %324 = vmatprep.subr.mxu0 0.0
        %325 = vmatpush1.msra.mxu0 0.0
        %326 = vmatprep.subr.mxu0 0.0
        %327 = vmatpush1.msra.mxu0 0.0
        %328 = vmatprep.subr.mxu0 0.0
        %329 = vmatpush1.msra.mxu0 0.0
        %330 = vmatprep.subr.mxu0 0.0
        %331 = vmatpush1.msra.mxu0 0.0
        %332 = vmatprep.subr.mxu0 0.0
        %333 = vmatpush1.msra.mxu0 0.0
        %334 = vmatprep.subr.mxu0 0.0
        %335 = vmatpush1.msra.mxu0 0.0
        %336 = vmatprep.subr.mxu0 0.0
        %337 = vmatpush1.msra.mxu0 0.0
        %338 = vmatprep.subr.mxu0 0.0
        %339 = vmatpush1.msra.mxu0 0.0
        %340 = vmatprep.subr.mxu0 0.0
        %341 = vmatpush1.msra.mxu0 0.0
        %342 = vmatprep.subr.mxu0 0.0
        %343 = vmatpush1.msra.mxu0 0.0
        %344 = vmatprep.subr.mxu0 0.0
        %345 = vmatpush1.msra.mxu0 0.0
        %346 = vmatprep.subr.mxu0 0.0
        %347 = vmatpush1.msra.mxu0 0.0
        %348 = vmatprep.subr.mxu0 0.0
        %349 = vmatpush1.msra.mxu0 0.0
        %350 = vmatprep.subr.mxu0 0.0
        %351 = vmatpush1.msra.mxu0 0.0
        %352 = vmatprep.subr.mxu0 0.0
        %353 = vmatpush1.msra.mxu0 0.0
        %354 = vmatprep.subr.mxu0 0.0
        %355 = vmatpush1.msra.mxu0 0.0
        %356 = vmatprep.subr.mxu0 0.0
        %357 = vmatpush1.msra.mxu0 0.0
        %358 = vmatprep.subr.mxu0 0.0
        %359 = vmatpush1.msra.mxu0 0.0
        %360 = vmatprep.subr.mxu0 0.0
        %361 = vmatpush1.msra.mxu0 0.0
        %362 = vmatprep.subr.mxu0 0.0
        %363 = vmatpush1.msra.mxu0 0.0
        %364 = vmatprep.subr.mxu0 0.0
        %365 = vmatpush1.msra.mxu0 0.0
        %366 = vmatprep.subr.mxu0 0.0
        %367 = vmatpush1.msra.mxu0 0.0
        %368 = vmatprep.subr.mxu0 0.0
        %369 = vmatpush1.msra.mxu0 0.0
        %370 = vmatprep.subr.mxu0 0.0
        %371 = vmatpush1.msra.mxu0 0.0
        %372 = vmatprep.subr.mxu0 0.0
        %373 = vmatpush1.msra.mxu0 0.0
        %374 = vmatprep.subr.mxu0 0.0
        %375 = vmatpush1.msra.mxu0 0.0
        %376 = vmatprep.subr.mxu0 0.0
        %377 = vmatpush1.msra.mxu0 0.0
        %378 = vmatprep.subr.mxu0 0.0
        %379 = vmatpush1.msra.mxu0 0.0
        %380 = vmatprep.subr.mxu0 0.0
        %381 = vmatpush1.msra.mxu0 0.0
        %382 = vmatprep.mubr.f32.mxu0 0.0
        %383 = vmatmul.mubr.f32.gmra.mrb[0].mxu0 %v228
        %v384 = vpop.f32.mrb[0].mxu0
        %v385 = vadd.f32 %v216, %v384
        %v386 = vpop.f32.mrb[0].mxu0
        %v387 = vadd.f32 %v216, %v386
        %388 = vdwg.mxu0
        %389 = vmatprep.subr.mxu0 %v241
        %390 = vmatpush1.msra.mxu0 %v239
        %391 = vmatprep.subr.mxu0 0.0
        %392 = vmatpush1.msra.mxu0 0.0
        %393 = vmatprep.subr.mxu0 0.0
        %394 = vmatpush1.msra.mxu0 0.0
        %395 = vmatprep.subr.mxu0 0.0
        %396 = vmatpush1.msra.mxu0 0.0
        %397 = vmatprep.subr.mxu0 0.0
        %398 = vmatpush1.msra.mxu0 0.0
        %399 = vmatprep.subr.mxu0 0.0
        %400 = vmatpush1.msra.mxu0 0.0
        %401 = vmatprep.subr.mxu0 0.0
        %402 = vmatpush1.msra.mxu0 0.0
        %403 = vmatprep.subr.mxu0 0.0
        %404 = vmatpush1.msra.mxu0 0.0
        %405 = vmatprep.subr.mxu0 0.0
        %406 = vmatpush1.msra.mxu0 0.0
        %407 = vmatprep.subr.mxu0 0.0
        %408 = vmatpush1.msra.mxu0 0.0
        %409 = vmatprep.subr.mxu0 0.0
        %410 = vmatpush1.msra.mxu0 0.0
        %411 = vmatprep.subr.mxu0 0.0
        %412 = vmatpush1.msra.mxu0 0.0
        %413 = vmatprep.subr.mxu0 0.0
        %414 = vmatpush1.msra.mxu0 0.0
        %415 = vmatprep.subr.mxu0 0.0
        %416 = vmatpush1.msra.mxu0 0.0
        %417 = vmatprep.subr.mxu0 0.0
        %418 = vmatpush1.msra.mxu0 0.0
        %419 = vmatprep.subr.mxu0 0.0
        %420 = vmatpush1.msra.mxu0 0.0
        %421 = vmatprep.subr.mxu0 0.0
        %422 = vmatpush1.msra.mxu0 0.0
        %423 = vmatprep.subr.mxu0 0.0
        %424 = vmatpush1.msra.mxu0 0.0
        %425 = vmatprep.subr.mxu0 0.0
        %426 = vmatpush1.msra.mxu0 0.0
        %427 = vmatprep.subr.mxu0 0.0
        %428 = vmatpush1.msra.mxu0 0.0
        %429 = vmatprep.subr.mxu0 0.0
        %430 = vmatpush1.msra.mxu0 0.0
        %431 = vmatprep.subr.mxu0 0.0
        %432 = vmatpush1.msra.mxu0 0.0
        %433 = vmatprep.subr.mxu0 0.0
        %434 = vmatpush1.msra.mxu0 0.0
        %435 = vmatprep.subr.mxu0 0.0
        %436 = vmatpush1.msra.mxu0 0.0
        %437 = vmatprep.subr.mxu0 0.0
        %438 = vmatpush1.msra.mxu0 0.0
        %439 = vmatprep.subr.mxu0 0.0
        %440 = vmatpush1.msra.mxu0 0.0
        %441 = vmatprep.subr.mxu0 0.0
        %442 = vmatpush1.msra.mxu0 0.0
        %443 = vmatprep.subr.mxu0 0.0
        %444 = vmatpush1.msra.mxu0 0.0
        %445 = vmatprep.subr.mxu0 0.0
        %446 = vmatpush1.msra.mxu0 0.0
        %447 = vmatprep.subr.mxu0 0.0
        %448 = vmatpush1.msra.mxu0 0.0
        %449 = vmatprep.subr.mxu0 0.0
        %450 = vmatpush1.msra.mxu0 0.0
        %451 = vmatprep.subr.mxu0 0.0
        %452 = vmatpush1.msra.mxu0 0.0
        %453 = vmatprep.mubr.f32.mxu0 0.0
        %454 = vmatmul.mubr.f32.gmra.mrb[0].mxu0 %v228
        %v455 = vpop.f32.mrb[0].mxu0
        %v456 = vadd.f32 %v216, %v455
        %v457 = vpop.f32.mrb[0].mxu0
        %v458 = vadd.f32 %v216, %v457
        %459 = vdwg.mxu0
        %460 = vmatprep.subr.mxu0 %v245
        %461 = vmatpush1.msra.mxu0 %v243
        %462 = vmatprep.subr.mxu0 0.0
        %463 = vmatpush1.msra.mxu0 0.0
        %464 = vmatprep.subr.mxu0 0.0
        %465 = vmatpush1.msra.mxu0 0.0
        %466 = vmatprep.subr.mxu0 0.0
        %467 = vmatpush1.msra.mxu0 0.0
        %468 = vmatprep.subr.mxu0 0.0
        %469 = vmatpush1.msra.mxu0 0.0
        %470 = vmatprep.subr.mxu0 0.0
        %471 = vmatpush1.msra.mxu0 0.0
        %472 = vmatprep.subr.mxu0 0.0
        %473 = vmatpush1.msra.mxu0 0.0
        %474 = vmatprep.subr.mxu0 0.0
        %475 = vmatpush1.msra.mxu0 0.0
        %476 = vmatprep.subr.mxu0 0.0
        %477 = vmatpush1.msra.mxu0 0.0
        %478 = vmatprep.subr.mxu0 0.0
        %479 = vmatpush1.msra.mxu0 0.0
        %480 = vmatprep.subr.mxu0 0.0
        %481 = vmatpush1.msra.mxu0 0.0
        %482 = vmatprep.subr.mxu0 0.0
        %483 = vmatpush1.msra.mxu0 0.0
        %484 = vmatprep.subr.mxu0 0.0
        %485 = vmatpush1.msra.mxu0 0.0
        %486 = vmatprep.subr.mxu0 0.0
        %487 = vmatpush1.msra.mxu0 0.0
        %488 = vmatprep.subr.mxu0 0.0
        %489 = vmatpush1.msra.mxu0 0.0
        %490 = vmatprep.subr.mxu0 0.0
        %491 = vmatpush1.msra.mxu0 0.0
        %492 = vmatprep.subr.mxu0 0.0
        %493 = vmatpush1.msra.mxu0 0.0
        %494 = vmatprep.subr.mxu0 0.0
        %495 = vmatpush1.msra.mxu0 0.0
        %496 = vmatprep.subr.mxu0 0.0
        %497 = vmatpush1.msra.mxu0 0.0
        %498 = vmatprep.subr.mxu0 0.0
        %499 = vmatpush1.msra.mxu0 0.0
        %500 = vmatprep.subr.mxu0 0.0
        %501 = vmatpush1.msra.mxu0 0.0
        %502 = vmatprep.subr.mxu0 0.0
        %503 = vmatpush1.msra.mxu0 0.0
        %504 = vmatprep.subr.mxu0 0.0
        %505 = vmatpush1.msra.mxu0 0.0
        %506 = vmatprep.subr.mxu0 0.0
        %507 = vmatpush1.msra.mxu0 0.0
        %508 = vmatprep.subr.mxu0 0.0
        %509 = vmatpush1.msra.mxu0 0.0
        %510 = vmatprep.subr.mxu0 0.0
        %511 = vmatpush1.msra.mxu0 0.0
        %512 = vmatprep.subr.mxu0 0.0
        %513 = vmatpush1.msra.mxu0 0.0
        %514 = vmatprep.subr.mxu0 0.0
        %515 = vmatpush1.msra.mxu0 0.0
        %516 = vmatprep.subr.mxu0 0.0
        %517 = vmatpush1.msra.mxu0 0.0
        %518 = vmatprep.subr.mxu0 0.0
        %519 = vmatpush1.msra.mxu0 0.0
        %520 = vmatprep.subr.mxu0 0.0
        %521 = vmatpush1.msra.mxu0 0.0
        %522 = vmatprep.subr.mxu0 0.0
        %523 = vmatpush1.msra.mxu0 0.0
        %524 = vmatprep.mubr.f32.mxu0 0.0
        %525 = vmatmul.mubr.f32.gmra.mrb[0].mxu0 %v228
        %v526 = vpop.f32.mrb[0].mxu0
        %v527 = vadd.f32 %v216, %v526
        %v528 = vpop.f32.mrb[0].mxu0
        %v529 = vadd.f32 %v216, %v528
        %530 = vdwg.mxu0
        %v539 = vcombine.low %v314, %v316
        %v540 = vcombine.low %v385, %v387
        %v541 = vcombine.low %v456, %v458
        %v542 = vcombine.low %v527, %v529
        %547 = vst [vmem:[%s204] sm:$0xff] %v539
        %548 = vst [vmem:[%s204 + $0x8] sm:$0xff] %v540
        %549 = vst [vmem:[%s204 + $0x10] sm:$0xff] %v541
        %550 = vst [vmem:[%s204 + $0x18] sm:$0xff] %v542
        %s551 = sand.u32 %s112, 1
        %s552 = scalar_lea.sflag [#allocation4], %s551
        %s553 = sand.u32 %s112, 1
        %s554 = smul.addr %s553, 32
        %s555 = scalar_lea.vmem [#allocation5], %s554
        // Predicated region
        $region37: #{tpu_custom_call.1} parent=31 // pred_check
          %p556 = pneg %p122
        $region38: #{tpu_custom_call.1} parent=31 // pred_check_branch
          %558 = sbr.rel (%p556) target = $region40
        $region39: #{tpu_custom_call.1} parent=31 // pred_region
          %s559 = smul.u32 8, %s25
          %s561 = ssub.s32 512, 512
          %562 = vsyncadd %s552, %s561
          %s563 = smul.addr %s24, 8
          %s564 = sadd.s32 %s559, %s563
          %s565 = smul.addr %s564, 64
          %s566 = scalar_lea.hbm %s3, %s565
          %s568 = sshll.u32 %s555, 4
          %s569 = int_to_ptr.vmem [resolvable:$true] %s568
          %571 = dma.vmem_to_hbm [thread:$0]  %s569, 512, %s566, %s552
        $region40: #{tpu_custom_call.1} parent=31 // pred_fallthru
          _
      $region32: #{tpu_custom_call.1} parent=5 // pred_fallthru
        _
      %p572 = scmp.le.s32.totalorder 2, %s15
      // Predicated region
      $region41: #{tpu_custom_call.1} parent=5 // pred_check
        %p573 = pneg %p572
      $region42: #{tpu_custom_call.1} parent=5 // pred_check_branch
        %575 = sbr.rel (%p573) target = $region44
      $region43: #{tpu_custom_call.1} parent=5 // pred_region
        %s576 = ssub.s32 %s15, 2
        // Predicated region
        $region45: #{tpu_custom_call.1} parent=43 // pred_check
          %p577 = pneg %p128
        $region46: #{tpu_custom_call.1} parent=43 // pred_check_branch
          %579 = sbr.rel (%p577) target = $region48
        $region47: #{tpu_custom_call.1} parent=43 // pred_region
          %s580 = sand.u32 %s113, 1
          %s581 = scalar_lea.sflag [#allocation4], %s580
          %s582 = sand.u32 %s113, 1
          %s583 = smul.addr %s582, 32
          %s584 = scalar_lea.vmem [#allocation5], %s583
          %585 = dma.done %s581, 512
        $region48: #{tpu_custom_call.1} parent=43 // pred_fallthru
          _
      $region44: #{tpu_custom_call.1} parent=5 // pred_fallthru
        _
    $region6: #{tpu_custom_call.1} parent=1 // loop_footer
      %s19 = sadd.s32 1, %s15
    $region7: #{tpu_custom_call.1} parent=1 // loop_footer_branch
      %14 = sbr.rel target = $region3
    $region8: #{tpu_custom_call.1} parent=1 // loop_exit
      _
    %586 = vsyncpa [#allocation3], 1
    %s587 = scalar_lea.sflag [#allocation3], 1
    %588 = vsyncpa %s587, 1
    %589 = vsyncpa [#allocation4], 1
    %s590 = scalar_lea.sflag [#allocation4], 1
    %591 = vsyncpa %s590, 1

</llo_original>
